<compile_context>
chip_gen: v5e
topology: v5e:2x2
jax: 0.10.0
libtpu: 0.0.40
codegen_flags: <defaults>
</compile_context>

<pallas_src>
import jax
import jax.numpy as jnp
from jax.experimental import pallas as pl
from jax.experimental.pallas import tpu as pltpu


def _round_up(n, m):
    return ((n + m - 1) // m) * m


def mlp_kernel(x_ref, w1_ref, b1_ref, w2_ref, b2_ref, w3_ref, b3_ref, o_ref):
    # Layer 1: (TB, IN_P) @ (IN_P, 128) -> f32 accumulate; bias + relu in f32.
    h1 = jnp.dot(x_ref[...], w1_ref[...], preferred_element_type=jnp.float32)
    h1 = jnp.maximum(h1 + b1_ref[...], 0.0)
    # Layer 2: cast activation to the weight compute dtype (bf16) only for the MXU operand.
    h2 = jnp.dot(h1.astype(w2_ref.dtype), w2_ref[...], preferred_element_type=jnp.float32)
    h2 = jnp.maximum(h2 + b2_ref[...], 0.0)
    # Layer 3: output is lane-dense (OUT_P multiple of 128) -> unmasked stores.
    o = jnp.dot(h2.astype(w3_ref.dtype), w3_ref[...], preferred_element_type=jnp.float32)
    o_ref[...] = (o + b3_ref[...]).astype(o_ref.dtype)


def _choose_batch_tile(B, batch_tile, sublane_mult):
    # Cap the tile so small batches are not over-padded, and aim for >= 2 grid steps
    # when B allows it (lets dimension_semantics=("parallel",) shard across v7x's 2 TCs).
    half = -(-B // 2)
    tile = min(batch_tile, _round_up(half, sublane_mult))
    return max(tile, sublane_mult)


def pose_vectorizer_forward(x, params, *, batch_tile=512, compute_dtype=jnp.bfloat16):
    """x: (B, input_size) float32.  params: dict of w1,b1,w2,b2,w3,b3 (float32)."""
    B, in_dim = x.shape
    w1, b1 = params["w1"], params["b1"]
    w2, b2 = params["w2"], params["b2"]
    w3, b3 = params["w3"], params["b3"]
    H1 = w1.shape[1]           # 128
    H2 = w2.shape[1]           # 64
    out_dim = w3.shape[1]

    LANE = 128
    sub = 16 if compute_dtype == jnp.bfloat16 else 8
    in_p = _round_up(in_dim, LANE)     # lane-dense input features
    out_p = _round_up(out_dim, LANE)   # lane-dense output features (unmasked vst)

    tile = _choose_batch_tile(B, batch_tile, sub)
    B_pad = _round_up(B, tile)

    # Wrapper-side layout plumbing: zero-pad + cast (padding contributes exact zeros).
    x_p = jnp.zeros((B_pad, in_p), compute_dtype).at[:B, :in_dim].set(x.astype(compute_dtype))
    w1_p = jnp.zeros((in_p, H1), compute_dtype).at[:in_dim, :].set(w1.astype(compute_dtype))
    w2_c = w2.astype(compute_dtype)
    w3_p = jnp.zeros((H2, out_p), compute_dtype).at[:, :out_dim].set(w3.astype(compute_dtype))
    b1_f = b1.astype(jnp.float32)
    b2_f = b2.astype(jnp.float32)
    b3_p = jnp.zeros((1, out_p), jnp.float32).at[:, :out_dim].set(b3.astype(jnp.float32))

    grid = (B_pad // tile,)

    in_specs = [
        pl.BlockSpec((tile, in_p), lambda i: (i, 0)),      # x tile (batch-tiled)
        pl.BlockSpec(w1_p.shape, lambda i: (0, 0)),        # w1 (resident)
        pl.BlockSpec(b1_f.shape, lambda i: (0, 0)),        # b1
        pl.BlockSpec(w2_c.shape, lambda i: (0, 0)),        # w2
        pl.BlockSpec(b2_f.shape, lambda i: (0, 0)),        # b2
        pl.BlockSpec(w3_p.shape, lambda i: (0, 0)),        # w3
        pl.BlockSpec(b3_p.shape, lambda i: (0, 0)),        # b3
    ]
    out_spec = pl.BlockSpec((tile, out_p), lambda i: (i, 0))

    flops = 2 * B_pad * (in_p * H1 + H1 * H2 + H2 * out_p)
    bytes_accessed = int(
        x_p.size * x_p.dtype.itemsize
        + sum(a.size * a.dtype.itemsize for a in (w1_p, b1_f, w2_c, b2_f, w3_p, b3_p))
        + B_pad * out_p * 4
    )

    out_padded = pl.pallas_call(
        mlp_kernel,
        out_shape=jax.ShapeDtypeStruct((B_pad, out_p), jnp.float32),
        grid_spec=pltpu.PrefetchScalarGridSpec(
            num_scalar_prefetch=0,
            grid=grid,
            in_specs=in_specs,
            out_specs=out_spec,
        ),
        compiler_params=pltpu.CompilerParams(
            dimension_semantics=("parallel",),
        ),
        cost_estimate=pl.CostEstimate(
            flops=flops, transcendentals=0, bytes_accessed=bytes_accessed),
    )(x_p, w1_p, b1_f, w2_c, b2_f, w3_p, b3_p)

    # Slice away the batch / lane padding.
    return out_padded[:B, :out_dim]


def init_params(key, input_size, output_size):
    """Deterministic synthetic init (PyTorch-like uniform fan-in scaling)."""
    dims = [(input_size, 128), (128, 64), (64, output_size)]
    params = {}
    for idx, (fan_in, fan_out) in enumerate(dims, start=1):
        key, kw, kb = jax.random.split(key, 3)
        bound = 1.0 / jnp.sqrt(jnp.float32(fan_in))
        # Stored as (in, out) == transpose of PyTorch's (out, in) Linear weight.
        params[f"w{idx}"] = jax.random.uniform(
            kw, (fan_in, fan_out), jnp.float32, -bound, bound)
        params[f"b{idx}"] = jax.random.uniform(
            kb, (1, fan_out), jnp.float32, -bound, bound)
    return params


def reference_forward(x, params, compute_dtype=jnp.bfloat16):
    """Pure-JAX reference mimicking the kernel's bf16-operand / f32-accumulate scheme."""
    cd = compute_dtype
    h1 = jnp.maximum(
        jnp.dot(x.astype(cd), params["w1"].astype(cd),
                preferred_element_type=jnp.float32) + params["b1"], 0.0)
    h2 = jnp.maximum(
        jnp.dot(h1.astype(cd), params["w2"].astype(cd),
                preferred_element_type=jnp.float32) + params["b2"], 0.0)
    return jnp.dot(h2.astype(cd), params["w3"].astype(cd),
                   preferred_element_type=jnp.float32) + params["b3"]


if __name__ == "__main__":
    key = jax.random.PRNGKey(0)
    input_size = 32     # e.g. flattened pose keypoints
    output_size = 16
    batch = 48          # non-power-of-two -> exercises batch padding + a 2-step grid

    key, kx = jax.random.split(key)
    x = jax.random.normal(kx, (batch, input_size), jnp.float32)
    params = init_params(key, input_size, output_size)

    out = pose_vectorizer_forward(x, params)
    out = jax.block_until_ready(out)

    ref = reference_forward(x, params)
    assert out.shape == (batch, output_size), out.shape
    assert jnp.allclose(out, ref, atol=1e-2, rtol=1e-2), "mismatch vs reference"
    # Sanity vs full-f32 math (bf16 operands => loose tolerance).
    ref_f32 = reference_forward(x, params, compute_dtype=jnp.float32)
    assert jnp.allclose(out, ref_f32, atol=5e-2, rtol=5e-2), "mismatch vs f32 reference"

    print("KERNEL_OK")
</pallas_src>

<mosaic_0001>
module attributes {stable_mosaic.version = 11 : i64} {
  func.func @mlp_kernel(%arg0: i32, %arg1: memref<32x128xbf16, #tpu.memory_space<vmem>>, %arg2: memref<128x128xbf16, #tpu.memory_space<vmem>>, %arg3: memref<1x128xf32, #tpu.memory_space<vmem>>, %arg4: memref<128x64xbf16, #tpu.memory_space<vmem>>, %arg5: memref<1x64xf32, #tpu.memory_space<vmem>>, %arg6: memref<64x128xbf16, #tpu.memory_space<vmem>>, %arg7: memref<1x128xf32, #tpu.memory_space<vmem>>, %arg8: memref<32x128xf32, #tpu.memory_space<vmem>>) attributes {dimension_semantics = [#tpu.dimension_semantics<parallel>], iteration_bounds = array<i64: 2>, scalar_prefetch = 0 : i64, scratch_operands = 0 : i64, tpu.core_type = #tpu.core_type<tc>, window_params = [{transform_indices = @transform_0, window_bounds = array<i64: 32, 128>}, {pipeline_mode = #tpu.pipeline_mode<synchronous>, transform_indices = @transform_1, window_bounds = array<i64: 128, 128>}, {pipeline_mode = #tpu.pipeline_mode<synchronous>, transform_indices = @transform_2, window_bounds = array<i64: 1, 128>}, {pipeline_mode = #tpu.pipeline_mode<synchronous>, transform_indices = @transform_3, window_bounds = array<i64: 128, 64>}, {pipeline_mode = #tpu.pipeline_mode<synchronous>, transform_indices = @transform_4, window_bounds = array<i64: 1, 64>}, {pipeline_mode = #tpu.pipeline_mode<synchronous>, transform_indices = @transform_5, window_bounds = array<i64: 64, 128>}, {pipeline_mode = #tpu.pipeline_mode<synchronous>, transform_indices = @transform_6, window_bounds = array<i64: 1, 128>}, {transform_indices = @transform_7, window_bounds = array<i64: 32, 128>}]} {
    %c0 = arith.constant 0 : index
    %c0_0 = arith.constant 0 : index
    %0 = vector.load %arg1[%c0, %c0_0] : memref<32x128xbf16, #tpu.memory_space<vmem>>, vector<32x128xbf16>
    %c0_1 = arith.constant 0 : index
    %c0_2 = arith.constant 0 : index
    %1 = vector.load %arg2[%c0_1, %c0_2] : memref<128x128xbf16, #tpu.memory_space<vmem>>, vector<128x128xbf16>
    %cst = arith.constant dense<0.000000e+00> : vector<32x128xf32>
    %2 = tpu.matmul %0, %1, %cst {dimension_numbers = #tpu.dot_dimension_numbers<[1], [0], [0], [1], [0, 0, 1, 1], [], []>} : vector<32x128xbf16>, vector<128x128xbf16>, vector<32x128xf32> -> vector<32x128xf32>
    %c0_3 = arith.constant 0 : index
    %c0_4 = arith.constant 0 : index
    %3 = vector.load %arg3[%c0_3, %c0_4] : memref<1x128xf32, #tpu.memory_space<vmem>>, vector<1x128xf32>
    %4 = vector.broadcast %3 : vector<1x128xf32> to vector<32x128xf32>
    %5 = arith.addf %2, %4 : vector<32x128xf32>
    %cst_5 = arith.constant 0.000000e+00 : f32
    %6 = vector.broadcast %cst_5 : f32 to vector<32x128xf32>
    %7 = arith.maximumf %5, %6 : vector<32x128xf32>
    %8 = arith.truncf %7 : vector<32x128xf32> to vector<32x128xbf16>
    %c0_6 = arith.constant 0 : index
    %c0_7 = arith.constant 0 : index
    %9 = vector.load %arg4[%c0_6, %c0_7] : memref<128x64xbf16, #tpu.memory_space<vmem>>, vector<128x64xbf16>
    %cst_8 = arith.constant dense<0.000000e+00> : vector<32x64xf32>
    %10 = tpu.matmul %8, %9, %cst_8 {dimension_numbers = #tpu.dot_dimension_numbers<[1], [0], [0], [1], [0, 0, 1, 1], [], []>} : vector<32x128xbf16>, vector<128x64xbf16>, vector<32x64xf32> -> vector<32x64xf32>
    %c0_9 = arith.constant 0 : index
    %c0_10 = arith.constant 0 : index
    %11 = vector.load %arg5[%c0_9, %c0_10] : memref<1x64xf32, #tpu.memory_space<vmem>>, vector<1x64xf32>
    %12 = vector.broadcast %11 : vector<1x64xf32> to vector<32x64xf32>
    %13 = arith.addf %10, %12 : vector<32x64xf32>
    %cst_11 = arith.constant 0.000000e+00 : f32
    %14 = vector.broadcast %cst_11 : f32 to vector<32x64xf32>
    %15 = arith.maximumf %13, %14 : vector<32x64xf32>
    %16 = arith.truncf %15 : vector<32x64xf32> to vector<32x64xbf16>
    %c0_12 = arith.constant 0 : index
    %c0_13 = arith.constant 0 : index
    %17 = vector.load %arg6[%c0_12, %c0_13] : memref<64x128xbf16, #tpu.memory_space<vmem>>, vector<64x128xbf16>
    %cst_14 = arith.constant dense<0.000000e+00> : vector<32x128xf32>
    %18 = tpu.matmul %16, %17, %cst_14 {dimension_numbers = #tpu.dot_dimension_numbers<[1], [0], [0], [1], [0, 0, 1, 1], [], []>} : vector<32x64xbf16>, vector<64x128xbf16>, vector<32x128xf32> -> vector<32x128xf32>
    %c0_15 = arith.constant 0 : index
    %c0_16 = arith.constant 0 : index
    %19 = vector.load %arg7[%c0_15, %c0_16] : memref<1x128xf32, #tpu.memory_space<vmem>>, vector<1x128xf32>
    %20 = vector.broadcast %19 : vector<1x128xf32> to vector<32x128xf32>
    %21 = arith.addf %18, %20 : vector<32x128xf32>
    %c0_17 = arith.constant 0 : index
    %c0_18 = arith.constant 0 : index
    %22 = vector.load %arg8[%c0_17, %c0_18] : memref<32x128xf32, #tpu.memory_space<vmem>>, vector<32x128xf32>
    tpu.vector_store %arg8[%c0_17, %c0_18], %21 {strides = array<i32>} : memref<32x128xf32, #tpu.memory_space<vmem>>, vector<32x128xf32>,
    return
  }
  func.func @transform_0(%arg0: i32) -> (i32, i32) {
    %c0_i32 = arith.constant 0 : i32
    %c0_i32_0 = arith.constant 0 : i32
    return %arg0, %c0_i32 : i32, i32
  }
  func.func @transform_1(%arg0: i32) -> (i32, i32) {
    %c0_i32 = arith.constant 0 : i32
    %c0_i32_0 = arith.constant 0 : i32
    %c0_i32_1 = arith.constant 0 : i32
    return %c0_i32, %c0_i32_0 : i32, i32
  }
  func.func @transform_2(%arg0: i32) -> (i32, i32) {
    %c0_i32 = arith.constant 0 : i32
    %c0_i32_0 = arith.constant 0 : i32
    %c0_i32_1 = arith.constant 0 : i32
    return %c0_i32, %c0_i32_0 : i32, i32
  }
  func.func @transform_3(%arg0: i32) -> (i32, i32) {
    %c0_i32 = arith.constant 0 : i32
    %c0_i32_0 = arith.constant 0 : i32
    %c0_i32_1 = arith.constant 0 : i32
    return %c0_i32, %c0_i32_0 : i32, i32
  }
  func.func @transform_4(%arg0: i32) -> (i32, i32) {
    %c0_i32 = arith.constant 0 : i32
    %c0_i32_0 = arith.constant 0 : i32
    %c0_i32_1 = arith.constant 0 : i32
    return %c0_i32, %c0_i32_0 : i32, i32
  }
  func.func @transform_5(%arg0: i32) -> (i32, i32) {
    %c0_i32 = arith.constant 0 : i32
    %c0_i32_0 = arith.constant 0 : i32
    %c0_i32_1 = arith.constant 0 : i32
    return %c0_i32, %c0_i32_0 : i32, i32
  }
  func.func @transform_6(%arg0: i32) -> (i32, i32) {
    %c0_i32 = arith.constant 0 : i32
    %c0_i32_0 = arith.constant 0 : i32
    %c0_i32_1 = arith.constant 0 : i32
    return %c0_i32, %c0_i32_0 : i32, i32
  }
  func.func @transform_7(%arg0: i32) -> (i32, i32) {
    %c0_i32 = arith.constant 0 : i32
    %c0_i32_0 = arith.constant 0 : i32
    return %arg0, %c0_i32 : i32, i32
  }
}

</mosaic_0001>

<llo_original>
// kernel: tpu_custom_call.1
$region0: #{tpu_custom_call.1}
  #allocation0 [shape = 'u32[]', space=smem, size = 0x4, offset = 0x4, fixed_abs, tag = 'smem constant byte address 0x4 - core index']
  #allocation1 [shape = 'u32[72,128]{1,0:T(1,128)}', space=vmem, size = 0x9000, scoped, tag = 'internal scratch']
  %s0 = inlined_call_operand.vmem [shape: bf16[64,128], index: 0, kind: input, shape index: {}]
  %s1 = inlined_call_operand.vmem [shape: bf16[128,128], index: 1, kind: input, shape index: {}]
  %s2 = inlined_call_operand.vmem [shape: f32[1,128], index: 2, kind: input, shape index: {}]
  %s3 = inlined_call_operand.vmem [shape: bf16[128,64], index: 3, kind: input, shape index: {}]
  %s4 = inlined_call_operand.vmem [shape: f32[1,64], index: 4, kind: input, shape index: {}]
  %s5 = inlined_call_operand.hbm [shape: bf16[64,128], index: 5, kind: input, shape index: {}]
  %s6 = inlined_call_operand.vmem [shape: f32[1,128], index: 6, kind: input, shape index: {}]
  %s7 = inlined_call_operand.hbm [shape: f32[64,128], index: 7, kind: output, shape index: {}]
  %s8 = sld [smem:[#allocation0]]
  $region65: #{tpu_custom_call.1} parent=0
    _
  %s10 = ssub.s32 1, %s8
  %s11 = scalar_select 0, %s10, %s8
  $region1: #{tpu_custom_call.1} parent=0
    #allocation2 [shape = 'u8[16384]{0}', space=vmem, size = 0x4000, scoped, tag = 'input window, operand 5, single buffered']
    #allocation3 [shape = 's32[2]{0}', space=sflag, size = 0x8, scoped, tag = 'scoped memory for tpu_custom_call.1']
    #allocation4 [shape = 's32[2]{0}', space=sflag, size = 0x8, scoped, tag = 'scoped memory for tpu_custom_call.1']
    #allocation5 [shape = 'u8[32768]{0}', space=vmem, size = 0x8000, scoped, tag = 'output window, operand 0']
    %12 = vsyncpa [#allocation3], 0
    %13 = vsyncpa [#allocation4], 0
    %s14 = scalar_lea.sflag [#allocation4], 1
    %15 = vsyncpa %s14, 0
    loop: start=0, step=1, limit=4
    $region2: #{tpu_custom_call.1} parent=1 // loop_pre_header
      _
    $region3: #{tpu_custom_call.1} parent=1 // loop_header
      %s17 = sphi 0, %s21
      %p18 = scmp.ge.s32.totalorder %s17, 4
      %s27 = sphi 0, %s29
      %s30 = sphi 0, %s27
      %s31 = sphi 0, %s30
      %s47 = sphi 0, %s31
      %s51 = sphi 0, %s51
      %s53 = sphi 0, %s51
      %s54 = sphi 0, %s53
      %s68 = sphi 0, %s54
      %s72 = sphi 0, %s72
      %s74 = sphi 0, %s72
      %s75 = sphi 0, %s74
      %s89 = sphi 0, %s75
      %s93 = sphi 0, %s93
      %s95 = sphi 0, %s93
      %s96 = sphi 0, %s95
      %s110 = sphi 0, %s96
      %s114 = sphi 0, %s114
      %s116 = sphi 0, %s114
      %s117 = sphi 0, %s116
      %s131 = sphi 0, %s117
      %s135 = sphi 0, %s135
      %s137 = sphi 0, %s135
      %s138 = sphi 0, %s137
      %s152 = sphi 0, %s138
      %s156 = sphi 0, %s156
      %s158 = sphi 0, %s156
      %s159 = sphi 0, %s158
      %s173 = sphi 0, %s159
      %s179 = sphi 0, %s181
      %s182 = sphi 0, %s179
      %s183 = sphi 0, %s182
      %s199 = sphi 0, %s183
    $region4: #{tpu_custom_call.1} parent=1 // loop_header_branch
      %20 = sbr.rel (%p18) target = $region8
    $region5: #{tpu_custom_call.1} parent=1 // loop_body
      %s22 = ssub.s32 %s17, 1
      %s23 = ssub.s32 %s17, 2
      %s24 = sadd.s32 %s17, 1
      %s25 = ssub.s32 %s17, %s24
      %p26 = scmp.eq.s32.totalorder %s25, 0
      %s28 = sadd.s32 %s27, 1
      %s29 = scalar_select %p26, %s27, %s28
      %p32 = pneg %p26
      %p33 = scmp.eq.s32.totalorder %s17, 1
      %p34 = por %p32, %p33
      %p35 = scmp.ne.s32.totalorder %s27, %s30
      %p36 = scmp.eq.s32.totalorder %s17, 0
      %p37 = por %p35, %p36
      %p38 = scmp.ne.s32.totalorder %s27, %s30
      %p39 = scmp.eq.s32.totalorder %s22, 1
      %p40 = por %p38, %p39
      %p41 = scmp.ne.s32.totalorder %s30, %s31
      %p42 = scmp.eq.s32.totalorder %s22, 0
      %p43 = por %p41, %p42
      %p44 = scmp.ne.s32.totalorder %s30, %s31
      %p45 = scmp.eq.s32.totalorder %s23, 1
      %p46 = por %p44, %p45
      %p48 = scmp.ne.s32.totalorder %s31, %s47
      %p49 = scmp.eq.s32.totalorder %s23, 0
      %p50 = por %p48, %p49
      %s52 = sadd.s32 %s51, 1
      %p55 = scmp.eq.s32.totalorder %s17, 1
      %p56 = scmp.ne.s32.totalorder %s51, %s53
      %p57 = scmp.eq.s32.totalorder %s17, 0
      %p58 = por %p56, %p57
      %p59 = scmp.ne.s32.totalorder %s51, %s53
      %p60 = scmp.eq.s32.totalorder %s22, 1
      %p61 = por %p59, %p60
      %p62 = scmp.ne.s32.totalorder %s53, %s54
      %p63 = scmp.eq.s32.totalorder %s22, 0
      %p64 = por %p62, %p63
      %p65 = scmp.ne.s32.totalorder %s53, %s54
      %p66 = scmp.eq.s32.totalorder %s23, 1
      %p67 = por %p65, %p66
      %p69 = scmp.ne.s32.totalorder %s54, %s68
      %p70 = scmp.eq.s32.totalorder %s23, 0
      %p71 = por %p69, %p70
      %s73 = sadd.s32 %s72, 1
      %p76 = scmp.eq.s32.totalorder %s17, 1
      %p77 = scmp.ne.s32.totalorder %s72, %s74
      %p78 = scmp.eq.s32.totalorder %s17, 0
      %p79 = por %p77, %p78
      %p80 = scmp.ne.s32.totalorder %s72, %s74
      %p81 = scmp.eq.s32.totalorder %s22, 1
      %p82 = por %p80, %p81
      %p83 = scmp.ne.s32.totalorder %s74, %s75
      %p84 = scmp.eq.s32.totalorder %s22, 0
      %p85 = por %p83, %p84
      %p86 = scmp.ne.s32.totalorder %s74, %s75
      %p87 = scmp.eq.s32.totalorder %s23, 1
      %p88 = por %p86, %p87
      %p90 = scmp.ne.s32.totalorder %s75, %s89
      %p91 = scmp.eq.s32.totalorder %s23, 0
      %p92 = por %p90, %p91
      %s94 = sadd.s32 %s93, 1
      %p97 = scmp.eq.s32.totalorder %s17, 1
      %p98 = scmp.ne.s32.totalorder %s93, %s95
      %p99 = scmp.eq.s32.totalorder %s17, 0
      %p100 = por %p98, %p99
      %p101 = scmp.ne.s32.totalorder %s93, %s95
      %p102 = scmp.eq.s32.totalorder %s22, 1
      %p103 = por %p101, %p102
      %p104 = scmp.ne.s32.totalorder %s95, %s96
      %p105 = scmp.eq.s32.totalorder %s22, 0
      %p106 = por %p104, %p105
      %p107 = scmp.ne.s32.totalorder %s95, %s96
      %p108 = scmp.eq.s32.totalorder %s23, 1
      %p109 = por %p107, %p108
      %p111 = scmp.ne.s32.totalorder %s96, %s110
      %p112 = scmp.eq.s32.totalorder %s23, 0
      %p113 = por %p111, %p112
      %s115 = sadd.s32 %s114, 1
      %p118 = scmp.eq.s32.totalorder %s17, 1
      %p119 = scmp.ne.s32.totalorder %s114, %s116
      %p120 = scmp.eq.s32.totalorder %s17, 0
      %p121 = por %p119, %p120
      %p122 = scmp.ne.s32.totalorder %s114, %s116
      %p123 = scmp.eq.s32.totalorder %s22, 1
      %p124 = por %p122, %p123
      %p125 = scmp.ne.s32.totalorder %s116, %s117
      %p126 = scmp.eq.s32.totalorder %s22, 0
      %p127 = por %p125, %p126
      %p128 = scmp.ne.s32.totalorder %s116, %s117
      %p129 = scmp.eq.s32.totalorder %s23, 1
      %p130 = por %p128, %p129
      %p132 = scmp.ne.s32.totalorder %s117, %s131
      %p133 = scmp.eq.s32.totalorder %s23, 0
      %p134 = por %p132, %p133
      %s136 = sadd.s32 %s135, 1
      %p139 = scmp.eq.s32.totalorder %s17, 1
      %p140 = scmp.ne.s32.totalorder %s135, %s137
      %p141 = scmp.eq.s32.totalorder %s17, 0
      %p142 = por %p140, %p141
      %p143 = scmp.ne.s32.totalorder %s135, %s137
      %p144 = scmp.eq.s32.totalorder %s22, 1
      %p145 = por %p143, %p144
      %p146 = scmp.ne.s32.totalorder %s137, %s138
      %p147 = scmp.eq.s32.totalorder %s22, 0
      %p148 = por %p146, %p147
      %p149 = scmp.ne.s32.totalorder %s137, %s138
      %p150 = scmp.eq.s32.totalorder %s23, 1
      %p151 = por %p149, %p150
      %p153 = scmp.ne.s32.totalorder %s138, %s152
      %p154 = scmp.eq.s32.totalorder %s23, 0
      %p155 = por %p153, %p154
      %s157 = sadd.s32 %s156, 1
      %p160 = scmp.eq.s32.totalorder %s17, 1
      %p161 = scmp.ne.s32.totalorder %s156, %s158
      %p162 = scmp.eq.s32.totalorder %s17, 0
      %p163 = por %p161, %p162
      %p164 = scmp.ne.s32.totalorder %s156, %s158
      %p165 = scmp.eq.s32.totalorder %s22, 1
      %p166 = por %p164, %p165
      %p167 = scmp.ne.s32.totalorder %s158, %s159
      %p168 = scmp.eq.s32.totalorder %s22, 0
      %p169 = por %p167, %p168
      %p170 = scmp.ne.s32.totalorder %s158, %s159
      %p171 = scmp.eq.s32.totalorder %s23, 1
      %p172 = por %p170, %p171
      %p174 = scmp.ne.s32.totalorder %s159, %s173
      %p175 = scmp.eq.s32.totalorder %s23, 0
      %p176 = por %p174, %p175
      %s177 = ssub.s32 %s17, %s24
      %p178 = scmp.eq.s32.totalorder %s177, 0
      %s180 = sadd.s32 %s179, 1
      %s181 = scalar_select %p178, %s179, %s180
      %p184 = pneg %p178
      %p185 = scmp.eq.s32.totalorder %s17, 1
      %p186 = por %p184, %p185
      %p187 = scmp.ne.s32.totalorder %s179, %s182
      %p188 = scmp.eq.s32.totalorder %s17, 0
      %p189 = por %p187, %p188
      %p190 = scmp.ne.s32.totalorder %s179, %s182
      %p191 = scmp.eq.s32.totalorder %s22, 1
      %p192 = por %p190, %p191
      %p193 = scmp.ne.s32.totalorder %s182, %s183
      %p194 = scmp.eq.s32.totalorder %s22, 0
      %p195 = por %p193, %p194
      %p196 = scmp.ne.s32.totalorder %s182, %s183
      %p197 = scmp.eq.s32.totalorder %s23, 1
      %p198 = por %p196, %p197
      %p200 = scmp.ne.s32.totalorder %s183, %s199
      %p201 = scmp.eq.s32.totalorder %s23, 0
      %p202 = por %p200, %p201
      %p203 = scmp.le.s32.totalorder 1, %s17
      %p204 = scmp.lt.s32.totalorder %s17, 3
      %p205 = pnand %p203, %p204
      %p206 = pneg %p205
      // Predicated region
      $region9: #{tpu_custom_call.1} parent=5 // pred_check
        _
      $region10: #{tpu_custom_call.1} parent=5 // pred_check_branch
        %208 = sbr.rel (%p205) target = $region12
      $region11: #{tpu_custom_call.1} parent=5 // pred_region
        %s209 = ssub.s32 %s17, 1
        // Predicated region
        $region13: #{tpu_custom_call.1} parent=11 // pred_check
          %p210 = pneg %p64
        $region14: #{tpu_custom_call.1} parent=11 // pred_check_branch
          %212 = sbr.rel (%p210) target = $region16
        $region15: #{tpu_custom_call.1} parent=11 // pred_region
          _
        $region16: #{tpu_custom_call.1} parent=11 // pred_fallthru
          _
        // Predicated region
        $region17: #{tpu_custom_call.1} parent=11 // pred_check
          %p213 = pneg %p85
        $region18: #{tpu_custom_call.1} parent=11 // pred_check_branch
          %215 = sbr.rel (%p213) target = $region20
        $region19: #{tpu_custom_call.1} parent=11 // pred_region
          _
        $region20: #{tpu_custom_call.1} parent=11 // pred_fallthru
          _
        // Predicated region
        $region21: #{tpu_custom_call.1} parent=11 // pred_check
          %p216 = pneg %p106
        $region22: #{tpu_custom_call.1} parent=11 // pred_check_branch
          %218 = sbr.rel (%p216) target = $region24
        $region23: #{tpu_custom_call.1} parent=11 // pred_region
          _
        $region24: #{tpu_custom_call.1} parent=11 // pred_fallthru
          _
        // Predicated region
        $region25: #{tpu_custom_call.1} parent=11 // pred_check
          %p219 = pneg %p127
        $region26: #{tpu_custom_call.1} parent=11 // pred_check_branch
          %221 = sbr.rel (%p219) target = $region28
        $region27: #{tpu_custom_call.1} parent=11 // pred_region
          _
        $region28: #{tpu_custom_call.1} parent=11 // pred_fallthru
          _
        // Predicated region
        $region29: #{tpu_custom_call.1} parent=11 // pred_check
          %p222 = pneg %p148
        $region30: #{tpu_custom_call.1} parent=11 // pred_check_branch
          %224 = sbr.rel (%p222) target = $region32
        $region31: #{tpu_custom_call.1} parent=11 // pred_region
          %226 = vsyncadd [#allocation3], 0
          %s227 = sshll.u32 %s5, 4
          %s228 = int_to_ptr.hbm [resolvable:$true] %s227
          %s229 = sshll.u32 [#allocation2], 4
          %s230 = int_to_ptr.vmem [resolvable:$true] %s229
          %235 = dma.hbm_to_vmem [thread:$0]  %s228, 512, %s230, [#allocation3], 64, 64, 4
        $region32: #{tpu_custom_call.1} parent=11 // pred_fallthru
          _
        // Predicated region
        $region33: #{tpu_custom_call.1} parent=11 // pred_check
          %p236 = pneg %p169
        $region34: #{tpu_custom_call.1} parent=11 // pred_check_branch
          %238 = sbr.rel (%p236) target = $region36
        $region35: #{tpu_custom_call.1} parent=11 // pred_region
          _
        $region36: #{tpu_custom_call.1} parent=11 // pred_fallthru
          _
      $region12: #{tpu_custom_call.1} parent=5 // pred_fallthru
        _
      %p239 = scmp.lt.s32.totalorder %s17, 2
      // Predicated region
      $region37: #{tpu_custom_call.1} parent=5 // pred_check
        %p240 = pneg %p239
      $region38: #{tpu_custom_call.1} parent=5 // pred_check_branch
        %242 = sbr.rel (%p240) target = $region40
      $region39: #{tpu_custom_call.1} parent=5 // pred_region
        // Predicated region
        $region41: #{tpu_custom_call.1} parent=39 // pred_check
          %p243 = pneg %p37
        $region42: #{tpu_custom_call.1} parent=39 // pred_check_branch
          %245 = sbr.rel (%p243) target = $region44
        $region43: #{tpu_custom_call.1} parent=39 // pred_region
          %s246 = smul.u32 4, %s17
          %p247 = scmp.lt.s32.totalorder %s246, 7
          %s248 = scalar_select %p247, %s246, 7
          %s249 = smul.addr %s248, 4
          %s250 = scalar_lea.vmem %s0, %s249
          %s251 = smul.u32 4, %s17
        $region44: #{tpu_custom_call.1} parent=39 // pred_fallthru
          _
      $region40: #{tpu_custom_call.1} parent=5 // pred_fallthru
        _
      %p252 = scmp.le.s32.totalorder 1, %s17
      %p253 = scmp.lt.s32.totalorder %s17, 3
      %p254 = pnand %p252, %p253
      %p255 = pneg %p254
      // Predicated region
      $region45: #{tpu_custom_call.1} parent=5 // pred_check
        _
      $region46: #{tpu_custom_call.1} parent=5 // pred_check_branch
        %257 = sbr.rel (%p254) target = $region48
      $region47: #{tpu_custom_call.1} parent=5 // pred_region
        %s258 = ssub.s32 %s17, 1
        // Predicated region
        $region49: #{tpu_custom_call.1} parent=47 // pred_check
          %p259 = pneg %p148
        $region50: #{tpu_custom_call.1} parent=47 // pred_check_branch
          %261 = sbr.rel (%p259) target = $region52
        $region51: #{tpu_custom_call.1} parent=47 // pred_region
          %263 = dma.done [#allocation3], 512
        $region52: #{tpu_custom_call.1} parent=47 // pred_fallthru
          _
        %s264 = smul.u32 4, %s22
        %p265 = scmp.lt.s32.totalorder %s264, 7
        %s266 = scalar_select %p265, %s264, 7
        %s267 = smul.addr %s266, 4
        %s268 = scalar_lea.vmem %s0, %s267
        %p269 = pneg %p43
        %p270 = pneg %p40
        %p271 = pneg %p64
        %p272 = pneg %p61
        %p273 = pneg %p85
        %p274 = pneg %p82
        %p275 = pneg %p106
        %p276 = pneg %p103
        %p277 = pneg %p127
        %p278 = pneg %p124
        %p279 = pneg %p148
        %p280 = pneg %p145
        %p281 = pneg %p169
        %p282 = pneg %p166
        %p283 = pneg %p195
        %p284 = pneg %p192
        %s285 = sand.u32 %s182, 1
        %s286 = scalar_lea.sflag [#allocation4], %s285
        %s287 = sand.u32 %s182, 1
        %s288 = smul.addr %s287, 32
        %s289 = scalar_lea.vmem [#allocation5], %s288
        %s290 = smul.u32 4, %s22
        %p291 = scmp.lt.s32.totalorder %s290, 7
        %s292 = scalar_select %p291, %s290, 7
        %s293 = smul.addr %s292, 4
        %s294 = scalar_lea.vmem %s0, %s293
        %s295 = smul.u32 4, %s22
        %s296 = smul.u32 4, %s22
        %v298 = vld [vmem:[%s294] sm:$0xf]
        %v299 = vld [vmem:[%s294 + $0x4] sm:$0xf]
        %v300 = vld [vmem:[%s294 + $0x8] sm:$0xf]
        %v301 = vld [vmem:[%s294 + $0xc] sm:$0xf]
        %v302 = vld [vmem:[%s1] sm:$0xf]
        %v303 = vld [vmem:[%s1 + $0x4] sm:$0xf]
        %v304 = vld [vmem:[%s1 + $0x8] sm:$0xf]
        %v305 = vld [vmem:[%s1 + $0xc] sm:$0xf]
        %v306 = vld [vmem:[%s1 + $0x10] sm:$0xf]
        %v307 = vld [vmem:[%s1 + $0x14] sm:$0xf]
        %v308 = vld [vmem:[%s1 + $0x18] sm:$0xf]
        %v309 = vld [vmem:[%s1 + $0x1c] sm:$0xf]
        %v310 = vld [vmem:[%s1 + $0x20] sm:$0xf]
        %v311 = vld [vmem:[%s1 + $0x24] sm:$0xf]
        %v312 = vld [vmem:[%s1 + $0x28] sm:$0xf]
        %v313 = vld [vmem:[%s1 + $0x2c] sm:$0xf]
        %v314 = vld [vmem:[%s1 + $0x30] sm:$0xf]
        %v315 = vld [vmem:[%s1 + $0x34] sm:$0xf]
        %v316 = vld [vmem:[%s1 + $0x38] sm:$0xf]
        %v317 = vld [vmem:[%s1 + $0x3c] sm:$0xf]
        %v318 = vld [vmem:[%s2] sm:$0x1]
        %v320 = vperm.slane %v318, 0
        %v326 = vunpack.c.l.b16 %v298
        %v327 = vunpack.c.l.b16 %v299
        %v328 = vunpack.c.l.b16 %v300
        %v329 = vunpack.c.l.b16 %v301
        %v330 = vpack.c.b16 %v327, %v326
        %v331 = vpack.c.b16 %v329, %v328
        %v350 = vunpack.c.l.b16 %v302
        %v351 = vunpack.c.l.b16 %v303
        %v352 = vunpack.c.l.b16 %v304
        %v353 = vunpack.c.l.b16 %v305
        %v354 = vunpack.c.l.b16 %v306
        %v355 = vunpack.c.l.b16 %v307
        %v356 = vunpack.c.l.b16 %v308
        %v357 = vunpack.c.l.b16 %v309
        %v358 = vunpack.c.l.b16 %v310
        %v359 = vunpack.c.l.b16 %v311
        %v360 = vunpack.c.l.b16 %v312
        %v361 = vunpack.c.l.b16 %v313
        %v362 = vunpack.c.l.b16 %v314
        %v363 = vunpack.c.l.b16 %v315
        %v364 = vunpack.c.l.b16 %v316
        %v365 = vunpack.c.l.b16 %v317
        %v366 = vpack.c.b16 %v351, %v350
        %v367 = vpack.c.b16 %v353, %v352
        %v368 = vpack.c.b16 %v355, %v354
        %v369 = vpack.c.b16 %v357, %v356
        %v370 = vpack.c.b16 %v359, %v358
        %v371 = vpack.c.b16 %v361, %v360
        %v372 = vpack.c.b16 %v363, %v362
        %v373 = vpack.c.b16 %v365, %v364
        %382 = vmatpush.bf16.msra.mxu0 %v373
        %383 = vmatpush.bf16.msra.mxu0 %v372
        %384 = vmatpush.bf16.msra.mxu0 %v371
        %385 = vmatpush.bf16.msra.mxu0 %v370
        %386 = vmatpush.bf16.msra.mxu0 %v369
        %387 = vmatpush.bf16.msra.mxu0 %v368
        %388 = vmatpush.bf16.msra.mxu0 %v367
        %389 = vmatpush.bf16.msra.mxu0 %v366
        %390 = vmatmul.bf16.gmra.mxu0 %v330
        %v391 = vpop.f32.mrf.mxu0
        %v392 = vadd.f32 %v320, %v391
        %v393 = vpop.f32.mrf.mxu0
        %v394 = vadd.f32 %v320, %v393
        %395 = vmatmul.bf16.gmra.mxu0 %v331
        %v396 = vpop.f32.mrf.mxu0
        %v397 = vadd.f32 %v320, %v396
        %v398 = vpop.f32.mrf.mxu0
        %v399 = vadd.f32 %v320, %v398
        %400 = vdwg.mxu0
        %v401 = vmax.f32 %v392, 0.0
        %v402 = vmax.f32 %v394, 0.0
        %v403 = vmax.f32 %v397, 0.0
        %v404 = vmax.f32 %v399, 0.0
        %v405 = vpack.c.bf16 %v402, %v401
        %v406 = vpack.c.bf16 %v404, %v403
        %v407 = vld [vmem:[%s3] sm:$0xf]
        %v408 = vld [vmem:[%s3 + $0x4] sm:$0xf]
        %v409 = vld [vmem:[%s3 + $0x8] sm:$0xf]
        %v410 = vld [vmem:[%s3 + $0xc] sm:$0xf]
        %v411 = vld [vmem:[%s3 + $0x10] sm:$0xf]
        %v412 = vld [vmem:[%s3 + $0x14] sm:$0xf]
        %v413 = vld [vmem:[%s3 + $0x18] sm:$0xf]
        %v414 = vld [vmem:[%s3 + $0x1c] sm:$0xf]
        %v415 = vld [vmem:[%s3 + $0x20] sm:$0xf]
        %v416 = vld [vmem:[%s3 + $0x24] sm:$0xf]
        %v417 = vld [vmem:[%s3 + $0x28] sm:$0xf]
        %v418 = vld [vmem:[%s3 + $0x2c] sm:$0xf]
        %v419 = vld [vmem:[%s3 + $0x30] sm:$0xf]
        %v420 = vld [vmem:[%s3 + $0x34] sm:$0xf]
        %v421 = vld [vmem:[%s3 + $0x38] sm:$0xf]
        %v422 = vld [vmem:[%s3 + $0x3c] sm:$0xf]
        %v423 = vld [vmem:[%s4] sm:$0x1]
        %v425 = vperm.slane %v423, 0
        %v443 = vunpack.c.l.b16 %v407
        %v444 = vunpack.c.l.b16 %v408
        %v445 = vunpack.c.l.b16 %v409
        %v446 = vunpack.c.l.b16 %v410
        %v447 = vunpack.c.l.b16 %v411
        %v448 = vunpack.c.l.b16 %v412
        %v449 = vunpack.c.l.b16 %v413
        %v450 = vunpack.c.l.b16 %v414
        %v451 = vunpack.c.l.b16 %v415
        %v452 = vunpack.c.l.b16 %v416
        %v453 = vunpack.c.l.b16 %v417
        %v454 = vunpack.c.l.b16 %v418
        %v455 = vunpack.c.l.b16 %v419
        %v456 = vunpack.c.l.b16 %v420
        %v457 = vunpack.c.l.b16 %v421
        %v458 = vunpack.c.l.b16 %v422
        %v459 = vpack.c.b16 %v444, %v443
        %v460 = vpack.c.b16 %v446, %v445
        %v461 = vpack.c.b16 %v448, %v447
        %v462 = vpack.c.b16 %v450, %v449
        %v463 = vpack.c.b16 %v452, %v451
        %v464 = vpack.c.b16 %v454, %v453
        %v465 = vpack.c.b16 %v456, %v455
        %v466 = vpack.c.b16 %v458, %v457
        %475 = vmatpush.bf16.msra.mxu0 %v466
        %476 = vmatpush.bf16.msra.mxu0 %v465
        %477 = vmatpush.bf16.msra.mxu0 %v464
        %478 = vmatpush.bf16.msra.mxu0 %v463
        %479 = vmatpush.bf16.msra.mxu0 %v462
        %480 = vmatpush.bf16.msra.mxu0 %v461
        %481 = vmatpush.bf16.msra.mxu0 %v460
        %482 = vmatpush.bf16.msra.mxu0 %v459
        %483 = vmatmul.bf16.gmra.mxu0 %v405
        %v484 = vpop.f32.mrf.mxu0
        %v485 = vadd.f32 %v425, %v484
        %v486 = vpop.f32.mrf.mxu0
        %v487 = vadd.f32 %v425, %v486
        %488 = vmatmul.bf16.gmra.mxu0 %v406
        %v489 = vpop.f32.mrf.mxu0
        %v490 = vadd.f32 %v425, %v489
        %v491 = vpop.f32.mrf.mxu0
        %v492 = vadd.f32 %v425, %v491
        %493 = vdwg.mxu0
        %v494 = vmax.f32 %v485, 0.0
        %v495 = vmax.f32 %v487, 0.0
        %v496 = vmax.f32 %v490, 0.0
        %v497 = vmax.f32 %v492, 0.0
        %v498 = vpack.c.bf16 %v495, %v494
        %v499 = vpack.c.bf16 %v497, %v496
        %v500 = vld [vmem:[#allocation2] sm:$0xf]
        %v501 = vld [vmem:[#allocation2 + $0x4] sm:$0xf]
        %v502 = vld [vmem:[#allocation2 + $0x8] sm:$0xf]
        %v503 = vld [vmem:[#allocation2 + $0xc] sm:$0xf]
        %v504 = vld [vmem:[#allocation2 + $0x10] sm:$0xf]
        %v505 = vld [vmem:[#allocation2 + $0x14] sm:$0xf]
        %v506 = vld [vmem:[#allocation2 + $0x18] sm:$0xf]
        %v507 = vld [vmem:[#allocation2 + $0x1c] sm:$0xf]
        %v508 = vld [vmem:[%s6] sm:$0x1]
        %v510 = vperm.slane %v508, 0
        %v520 = vunpack.c.l.b16 %v500
        %v521 = vunpack.c.l.b16 %v501
        %v522 = vunpack.c.l.b16 %v502
        %v523 = vunpack.c.l.b16 %v503
        %v524 = vunpack.c.l.b16 %v504
        %v525 = vunpack.c.l.b16 %v505
        %v526 = vunpack.c.l.b16 %v506
        %v527 = vunpack.c.l.b16 %v507
        %v528 = vpack.c.b16 %v521, %v520
        %v529 = vpack.c.b16 %v523, %v522
        %v530 = vpack.c.b16 %v525, %v524
        %v531 = vpack.c.b16 %v527, %v526
        %vm536 = vcmask 523264
        %v538 = vsel %vm536, %v498, 0
        %v541 = vsel %vm536, %v499, 0
        %543 = vmatpush.bf16.msra.mxu0 0
        %544 = vmatpush.bf16.msra.mxu0 0
        %545 = vmatpush.bf16.msra.mxu0 0
        %546 = vmatpush.bf16.msra.mxu0 0
        %547 = vmatpush.bf16.msra.mxu0 %v531
        %548 = vmatpush.bf16.msra.mxu0 %v530
        %549 = vmatpush.bf16.msra.mxu0 %v529
        %550 = vmatpush.bf16.msra.mxu0 %v528
        %551 = vmatmul.bf16.gmra.mxu0 %v538
        %v552 = vpop.f32.mrf.mxu0
        %v553 = vadd.f32 %v510, %v552
        %v554 = vpop.f32.mrf.mxu0
        %v555 = vadd.f32 %v510, %v554
        %556 = vmatmul.bf16.gmra.mxu0 %v541
        %v557 = vpop.f32.mrf.mxu0
        %v558 = vadd.f32 %v510, %v557
        %v559 = vpop.f32.mrf.mxu0
        %v560 = vadd.f32 %v510, %v559
        %561 = vdwg.mxu0
        %562 = vst [vmem:[%s289] sm:$0xff] %v553
        %563 = vst [vmem:[%s289 + $0x8] sm:$0xff] %v555
        %564 = vst [vmem:[%s289 + $0x10] sm:$0xff] %v558
        %565 = vst [vmem:[%s289 + $0x18] sm:$0xff] %v560
        %s566 = sand.u32 %s182, 1
        %s567 = scalar_lea.sflag [#allocation4], %s566
        %s568 = sand.u32 %s182, 1
        %s569 = smul.addr %s568, 32
        %s570 = scalar_lea.vmem [#allocation5], %s569
        // Predicated region
        $region53: #{tpu_custom_call.1} parent=47 // pred_check
          %p571 = pneg %p192
        $region54: #{tpu_custom_call.1} parent=47 // pred_check_branch
          %573 = sbr.rel (%p571) target = $region56
        $region55: #{tpu_custom_call.1} parent=47 // pred_region
          %s574 = smul.u32 4, %s22
          %576 = vsyncadd %s567, 0
          %s577 = smul.addr %s574, 8
          %s578 = scalar_lea.hbm %s7, %s577
          %s579 = sshll.u32 %s570, 4
          %s580 = int_to_ptr.vmem [resolvable:$true] %s579
          %s581 = sshll.u32 %s578, 4
          %s582 = int_to_ptr.hbm [resolvable:$true] %s581
          %587 = dma.vmem_to_hbm [thread:$0]  %s580, 512, %s582, %s567, 128, 128, 8
        $region56: #{tpu_custom_call.1} parent=47 // pred_fallthru
          _
      $region48: #{tpu_custom_call.1} parent=5 // pred_fallthru
        _
      %p588 = scmp.le.s32.totalorder 2, %s17
      // Predicated region
      $region57: #{tpu_custom_call.1} parent=5 // pred_check
        %p589 = pneg %p588
      $region58: #{tpu_custom_call.1} parent=5 // pred_check_branch
        %591 = sbr.rel (%p589) target = $region60
      $region59: #{tpu_custom_call.1} parent=5 // pred_region
        %s592 = ssub.s32 %s17, 2
        // Predicated region
        $region61: #{tpu_custom_call.1} parent=59 // pred_check
          %p593 = pneg %p198
        $region62: #{tpu_custom_call.1} parent=59 // pred_check_branch
          %595 = sbr.rel (%p593) target = $region64
        $region63: #{tpu_custom_call.1} parent=59 // pred_region
          %s596 = sand.u32 %s183, 1
          %s597 = scalar_lea.sflag [#allocation4], %s596
          %s598 = sand.u32 %s183, 1
          %s599 = smul.addr %s598, 32
          %s600 = scalar_lea.vmem [#allocation5], %s599
          %602 = dma.done %s597, 512
        $region64: #{tpu_custom_call.1} parent=59 // pred_fallthru
          _
      $region60: #{tpu_custom_call.1} parent=5 // pred_fallthru
        _
    $region6: #{tpu_custom_call.1} parent=1 // loop_footer
      %s21 = sadd.s32 1, %s17
    $region7: #{tpu_custom_call.1} parent=1 // loop_footer_branch
      %16 = sbr.rel target = $region3
    $region8: #{tpu_custom_call.1} parent=1 // loop_exit
      _
    %603 = vsyncpa [#allocation3], 1
    %s604 = scalar_lea.sflag [#allocation3], 1
    %605 = vsyncpa %s604, 1
    %606 = vsyncpa [#allocation4], 1
    %s607 = scalar_lea.sflag [#allocation4], 1
    %608 = vsyncpa %s607, 1

</llo_original>
